<compile_context>
chip_gen: v7x
topology: tpu7x:2x2x1
jax: 0.10.0
libtpu: 0.0.40
codegen_flags: <defaults>
</compile_context>

<pallas_src>
import jax
import jax.numpy as jnp
from jax import lax
from jax.experimental import pallas as pl
from jax.experimental.pallas import tpu as pltpu

IN_FEATURES = 3
OUT_FEATURES = 11
# Inner compute chunk (8 lane-tiles of 128). Keeps the (11, CHUNK) accumulator
# at 16 vregs so the K=3 VPU FMA stays vreg-resident regardless of tile size.
LANE_CHUNK = 1024


def linear_kernel(x_ref, w_ref, o_ref):
    # x_ref: (IN, TB)   -- batch on lanes (dense)
    # w_ref: (OUT, IN)  -- tiny, resident across the whole grid
    # o_ref: (OUT, TB)  -- lane-dense output block (unmasked full-lane stores)
    w = w_ref[...]
    # Hoist the (OUT, 1) weight columns out of the chunk loop (loop-invariant;
    # JAX does not CSE broadcasts inside loops).
    w_cols = [w[:, k : k + 1] for k in range(IN_FEATURES)]
    tb = o_ref.shape[1]

    def body(c, carry):
        s = pl.multiple_of(c * LANE_CHUNK, LANE_CHUNK)
        xc = x_ref[:, pl.ds(s, LANE_CHUNK)]            # (IN, CHUNK), aligned
        # K=3 contraction on the VPU: out[j, b] = sum_k w[j, k] * x[k, b]
        acc = w_cols[0] * xc[0:1, :]
        for k in range(1, IN_FEATURES):
            acc = acc + w_cols[k] * xc[k : k + 1, :]
        o_ref[:, pl.ds(s, LANE_CHUNK)] = acc.astype(o_ref.dtype)
        return carry

    lax.fori_loop(0, tb // LANE_CHUNK, body, 0)


def net1_forward(xb, weight, *, block_b=128 * 1024, transposed_io=False):
    """net1.forward: xb @ weight.T.

    xb:     (B, IN)   [or (IN, B) if transposed_io=True]
    weight: (OUT, IN)
    returns (B, OUT)  [or (OUT, B) if transposed_io=True], float32.
    """
    w32 = weight.astype(jnp.float32)

    if transposed_io:
        xt = xb.astype(jnp.float32)        # already (IN, B), lane-dense
    else:
        # TODO(synk): the wrapper-side transposes add ~24B (input) + ~88B
        # (output) bytes of HBM traffic on top of the kernel's ~56B minimum;
        # callers that can produce/consume (IN,B)/(OUT,B) should pass
        # transposed_io=True to drop them entirely.
        xt = xb.astype(jnp.float32).T      # (IN, B)
    B = xt.shape[1]

    # ---- batch-tile selection ------------------------------------------------
    # * multiple of LANE_CHUNK (itself a multiple of 128) -> lane-aligned,
    #   unmasked stores and a remainder-free in-kernel chunk loop.
    # * capped at b_aligned//4 so the grid keeps >=4 steps for the pipeline
    #   (and megacore sharding on v7x) once the batch is large enough.
    # * capped so the double-buffered VMEM footprint (~192 B per lane:
    #   (8+16 sublane-padded rows) * 4 B * 2 buffers) stays under ~40 MiB,
    #   which fits every generation without per-chip special-casing.
    b_aligned = pl.cdiv(B, LANE_CHUNK) * LANE_CHUNK
    tb_cap = max((b_aligned // 4) // LANE_CHUNK * LANE_CHUNK, LANE_CHUNK)
    vmem_cap = ((40 << 20) // 192) // LANE_CHUNK * LANE_CHUNK
    tb = min(block_b, tb_cap, vmem_cap)
    tb = max(tb // LANE_CHUNK * LANE_CHUNK, LANE_CHUNK)
    assert tb % 128 == 0 and tb % LANE_CHUNK == 0
    b_padded = pl.cdiv(b_aligned, tb) * tb

    if b_padded != B:
        # Lane-axis pad; XLA fuses pad + transpose into one pass.
        xt = jnp.pad(xt, ((0, 0), (0, b_padded - B)))

    grid = (b_padded // tb,)

    # Explicit scoped-VMEM request derived from the actual double-buffered
    # footprint (+8 MiB headroom), so the big tile also works under v5e's
    # 16 MiB scoped default (v6e/v7x default is 32 MiB).
    vmem_limit = int(max(2 * (32 + 64) * tb + (8 << 20), 20 << 20))

    out_t = pl.pallas_call(
        linear_kernel,
        out_shape=jax.ShapeDtypeStruct((OUT_FEATURES, b_padded), jnp.float32),
        grid_spec=pltpu.PrefetchScalarGridSpec(
            num_scalar_prefetch=0,
            grid=grid,
            in_specs=[
                # x: stream batch tiles, double-buffered by the pipeline.
                # (pipeline depth is a cheap on-device sweep: add
                #  pipeline_mode=pl.Buffered(3) here + on out_specs if DMA
                #  writeback bubbles show up in a trace.)
                pl.BlockSpec((IN_FEATURES, tb), lambda i: (0, i)),
                # weight: constant block index -> fetched once, stays resident.
                pl.BlockSpec((OUT_FEATURES, IN_FEATURES), lambda i: (0, 0)),
            ],
            out_specs=pl.BlockSpec((OUT_FEATURES, tb), lambda i: (0, i)),
        ),
        compiler_params=pltpu.CompilerParams(
            # Batch axis is embarrassingly parallel (megacore sharding on v7x).
            dimension_semantics=("parallel",),
            vmem_limit_bytes=vmem_limit,
        ),
        cost_estimate=pl.CostEstimate(
            flops=2 * b_padded * IN_FEATURES * OUT_FEATURES,
            transcendentals=0,
            bytes_accessed=b_padded * (IN_FEATURES + OUT_FEATURES) * 4
            + OUT_FEATURES * IN_FEATURES * 4,
        ),
    )(xt, w32)

    out_t = out_t[:, :B]                   # drop lane padding
    return out_t if transposed_io else out_t.T


if __name__ == "__main__":
    key = jax.random.PRNGKey(0)
    k1, k2, k3 = jax.random.split(key, 3)

    # Small shapes consistent with the module: batch=8, in=3, out=11.
    B = 8
    xb = jax.random.normal(k1, (B, IN_FEATURES), dtype=jnp.float32)

    # Module spec: nn.init.constant_(fc1.weight, 0.0) -> all-zeros (11, 3).
    weight_zero = jnp.zeros((OUT_FEATURES, IN_FEATURES), dtype=jnp.float32)
    out = jax.block_until_ready(net1_forward(xb, weight_zero))
    ref = xb @ weight_zero.T
    assert out.shape == (B, OUT_FEATURES)
    assert jnp.allclose(out, ref, atol=1e-6)

    # Layout sanity check with a non-zero weight (an all-zeros weight cannot
    # detect a wrong contraction axis or a transposed output).
    w_rand = jax.random.normal(k2, (OUT_FEATURES, IN_FEATURES), dtype=jnp.float32)
    out2 = jax.block_until_ready(net1_forward(xb, w_rand))
    ref2 = xb @ w_rand.T
    assert out2.shape == (B, OUT_FEATURES)
    assert jnp.allclose(out2, ref2, atol=1e-5, rtol=1e-5)

    # Multi-step grid + lane-padding path (small forced tile -> 3 grid steps).
    B3 = 2500
    xb3 = jax.random.normal(k3, (B3, IN_FEATURES), dtype=jnp.float32)
    out3 = jax.block_until_ready(net1_forward(xb3, w_rand, block_b=LANE_CHUNK))
    ref3 = xb3 @ w_rand.T
    assert out3.shape == (B3, OUT_FEATURES)
    assert jnp.allclose(out3, ref3, atol=1e-5, rtol=1e-5)

    # Transposed-I/O fast path (producer/consumer accept lane-dense layouts,
    # dropping the wrapper transposes entirely).
    out4 = jax.block_until_ready(net1_forward(xb.T, w_rand, transposed_io=True))
    assert out4.shape == (OUT_FEATURES, B)
    assert jnp.allclose(out4.T, ref2, atol=1e-5, rtol=1e-5)

    print("KERNEL_OK")
</pallas_src>

<mosaic_0001>
module attributes {stable_mosaic.version = 11 : i64} {
  func.func @linear_kernel(%arg0: i32, %arg1: memref<3x1024xf32, #tpu.memory_space<vmem>>, %arg2: memref<11x3xf32, #tpu.memory_space<vmem>>, %arg3: memref<11x1024xf32, #tpu.memory_space<vmem>>) attributes {dimension_semantics = [#tpu.dimension_semantics<parallel>], iteration_bounds = array<i64: 1>, scalar_prefetch = 0 : i64, scratch_operands = 0 : i64, tpu.core_type = #tpu.core_type<tc>, window_params = [{transform_indices = @transform_0, window_bounds = array<i64: 3, 1024>}, {pipeline_mode = #tpu.pipeline_mode<synchronous>, transform_indices = @transform_1, window_bounds = array<i64: 11, 3>}, {transform_indices = @transform_2, window_bounds = array<i64: 11, 1024>}]} {
    %c0 = arith.constant 0 : index
    %c0_0 = arith.constant 0 : index
    %0 = vector.load %arg2[%c0, %c0_0] : memref<11x3xf32, #tpu.memory_space<vmem>>, vector<11x3xf32>
    %1 = vector.extract_strided_slice %0 {offsets = [0, 0], sizes = [11, 1], strides = [1, 1]} : vector<11x3xf32> to vector<11x1xf32>
    %2 = vector.extract_strided_slice %0 {offsets = [0, 1], sizes = [11, 1], strides = [1, 1]} : vector<11x3xf32> to vector<11x1xf32>
    %3 = vector.extract_strided_slice %0 {offsets = [0, 2], sizes = [11, 1], strides = [1, 1]} : vector<11x3xf32> to vector<11x1xf32>
    %c0_i32 = arith.constant 0 : i32
    %c1024_i32 = arith.constant 1024 : i32
    %4 = arith.muli %c0_i32, %c1024_i32 : i32
    %5 = tpu.assume_multiple %4, 1024 : i32
    %c0_1 = arith.constant 0 : index
    %6 = arith.index_cast %5 : i32 to index
    %7 = vector.load %arg1[%c0_1, %6] : memref<3x1024xf32, #tpu.memory_space<vmem>>, vector<3x1024xf32>
    %8 = vector.extract_strided_slice %7 {offsets = [0, 0], sizes = [1, 1024], strides = [1, 1]} : vector<3x1024xf32> to vector<1x1024xf32>
    %9 = vector.broadcast %1 : vector<11x1xf32> to vector<11x1024xf32>
    %10 = vector.broadcast %8 : vector<1x1024xf32> to vector<11x1024xf32>
    %11 = arith.mulf %9, %10 : vector<11x1024xf32>
    %12 = vector.extract_strided_slice %7 {offsets = [1, 0], sizes = [1, 1024], strides = [1, 1]} : vector<3x1024xf32> to vector<1x1024xf32>
    %13 = vector.broadcast %2 : vector<11x1xf32> to vector<11x1024xf32>
    %14 = vector.broadcast %12 : vector<1x1024xf32> to vector<11x1024xf32>
    %15 = arith.mulf %13, %14 : vector<11x1024xf32>
    %16 = arith.addf %11, %15 : vector<11x1024xf32>
    %17 = vector.extract_strided_slice %7 {offsets = [2, 0], sizes = [1, 1024], strides = [1, 1]} : vector<3x1024xf32> to vector<1x1024xf32>
    %18 = vector.broadcast %3 : vector<11x1xf32> to vector<11x1024xf32>
    %19 = vector.broadcast %17 : vector<1x1024xf32> to vector<11x1024xf32>
    %20 = arith.mulf %18, %19 : vector<11x1024xf32>
    %21 = arith.addf %16, %20 : vector<11x1024xf32>
    %c0_2 = arith.constant 0 : index
    %22 = arith.index_cast %5 : i32 to index
    %23 = vector.load %arg3[%c0_2, %22] : memref<11x1024xf32, #tpu.memory_space<vmem>>, vector<11x1024xf32>
    tpu.vector_store %arg3[%c0_2, %22], %21 {strides = array<i32>} : memref<11x1024xf32, #tpu.memory_space<vmem>>, vector<11x1024xf32>,
    %c1_i32 = arith.constant 1 : i32
    return
  }
  func.func @transform_0(%arg0: i32) -> (i32, i32) {
    %c0_i32 = arith.constant 0 : i32
    %c0_i32_0 = arith.constant 0 : i32
    return %c0_i32, %arg0 : i32, i32
  }
  func.func @transform_1(%arg0: i32) -> (i32, i32) {
    %c0_i32 = arith.constant 0 : i32
    %c0_i32_0 = arith.constant 0 : i32
    %c0_i32_1 = arith.constant 0 : i32
    return %c0_i32, %c0_i32_0 : i32, i32
  }
  func.func @transform_2(%arg0: i32) -> (i32, i32) {
    %c0_i32 = arith.constant 0 : i32
    %c0_i32_0 = arith.constant 0 : i32
    return %c0_i32, %arg0 : i32, i32
  }
}

</mosaic_0001>

<llo_original>
// kernel: tpu_custom_call.1
$region0: #{tpu_custom_call.1}
  #allocation0 [shape = 'u32[]', space=smem, size = 0x4, offset = 0x4, fixed_abs, tag = 'smem constant byte address 0x4 - core index']
  #allocation1 [shape = 'u32[144,128]{1,0:T(1,128)}', space=vmem, size = 0x12000, scoped, tag = 'internal scratch']
  %s0 = inlined_call_operand.hbm [shape: f32[3,1024], index: 0, kind: input, shape index: {}]
  %s1 = inlined_call_operand.vmem [shape: f32[11,3], index: 1, kind: input, shape index: {}]
  %s2 = inlined_call_operand.hbm [shape: f32[11,1024], index: 2, kind: output, shape index: {}]
  %s3 = sld [smem:[#allocation0]]
  $region22: #{tpu_custom_call.1} parent=0
    _
  %s5 = ssub.s32 1, %s3
  %s6 = scalar_select 0, %s5, %s3
  $region1: #{tpu_custom_call.1} parent=0
    #allocation2 [shape = 'u8[16384]{0}', space=vmem, size = 0x4000, scoped, tag = 'input window, operand 0, single buffered']
    #allocation3 [shape = 's32[1]{0}', space=sflag, size = 0x4, scoped, tag = 'scoped memory for tpu_custom_call.1']
    #allocation4 [shape = 's32[1]{0}', space=sflag, size = 0x4, scoped, tag = 'scoped memory for tpu_custom_call.1']
    #allocation5 [shape = 'u8[65536]{0}', space=vmem, size = 0x10000, scoped, tag = 'output window, operand 0, single buffered']
    %7 = vsyncpa [#allocation3], 0
    %8 = vsyncpa [#allocation4], 0
    // Predicated region
    $region2: #{tpu_custom_call.1} parent=1 // pred_check
      _
    $region3: #{tpu_custom_call.1} parent=1 // pred_check_branch
      %10 = sbr.rel (0) target = $region5
    $region4: #{tpu_custom_call.1} parent=1 // pred_region
      %s12 = ssub.s32 512, 512
      %13 = vsyncadd [#allocation3], %s12
      %s15 = sshll.u32 [#allocation2], 4
      %s16 = int_to_ptr.vmem [resolvable:$true] %s15
      %18 = dma.hbm_to_vmem [thread:$0]  %s0, 512, %s16, [#allocation3]
    $region5: #{tpu_custom_call.1} parent=1 // pred_fallthru
      _
    // Predicated region
    $region6: #{tpu_custom_call.1} parent=1 // pred_check
      _
    $region7: #{tpu_custom_call.1} parent=1 // pred_check_branch
      %20 = sbr.rel (0) target = $region9
    $region8: #{tpu_custom_call.1} parent=1 // pred_region
      _
    $region9: #{tpu_custom_call.1} parent=1 // pred_fallthru
      _
    // Predicated region
    $region10: #{tpu_custom_call.1} parent=1 // pred_check
      _
    $region11: #{tpu_custom_call.1} parent=1 // pred_check_branch
      %22 = sbr.rel (0) target = $region13
    $region12: #{tpu_custom_call.1} parent=1 // pred_region
      %23 = dma.done [#allocation3], 512
    $region13: #{tpu_custom_call.1} parent=1 // pred_fallthru
      _
    %v24 = vld [vmem:[%s1] sm:$0xff]
    %v25 = vld [vmem:[%s1 + $0x8] sm:$0x7]
    %v26 = vld [vmem:[#allocation2] sm:$0x77]
    %v27 = vld [vmem:[#allocation2 + $0x8] sm:$0x77]
    %v28 = vld [vmem:[#allocation2 + $0x10] sm:$0x77]
    %v29 = vld [vmem:[#allocation2 + $0x18] sm:$0x77]
    %31 = vset.pattern.permute.xlu0 0
    %32 = vperm.xlu0 %31, %v24
    %v33 = vpop.permute.xlu0 %32
    %36 = vset.pattern.permute.xlu0 0
    %37 = vperm.xlu0 %36, %v25
    %v38 = vpop.permute.xlu0 %37
    %v44 = vlaneseq
    %v45 = vshrl.u32 %v44, 7
    %v46 = vsub.s32 0, %v45
    %v47 = vrot.slane %v26, %v46
    %v48 = vlaneseq
    %v49 = vshrl.u32 %v48, 7
    %v50 = vsub.s32 4, %v49
    %v51 = vrot.slane %v26, %v50
    %v52 = vlaneseq
    %v53 = vshrl.u32 %v52, 7
    %v54 = vsub.s32 0, %v53
    %v55 = vrot.slane %v27, %v54
    %v56 = vlaneseq
    %v57 = vshrl.u32 %v56, 7
    %v58 = vsub.s32 4, %v57
    %v59 = vrot.slane %v27, %v58
    %v60 = vlaneseq
    %v61 = vshrl.u32 %v60, 7
    %v62 = vsub.s32 0, %v61
    %v63 = vrot.slane %v28, %v62
    %v64 = vlaneseq
    %v65 = vshrl.u32 %v64, 7
    %v66 = vsub.s32 4, %v65
    %v67 = vrot.slane %v28, %v66
    %v68 = vlaneseq
    %v69 = vshrl.u32 %v68, 7
    %v70 = vsub.s32 0, %v69
    %v71 = vrot.slane %v29, %v70
    %v72 = vlaneseq
    %v73 = vshrl.u32 %v72, 7
    %v74 = vsub.s32 4, %v73
    %v75 = vrot.slane %v29, %v74
    %v84 = vlaneseq
    %v85 = vshrl.u32 %v84, 7
    %v86 = vsub.s32 0, %v85
    %v87 = vrot.slane %v47, %v86
    %v88 = vlaneseq
    %v89 = vshrl.u32 %v88, 7
    %v90 = vsub.s32 0, %v89
    %v91 = vrot.slane %v51, %v90
    %v92 = vlaneseq
    %v93 = vshrl.u32 %v92, 7
    %v94 = vsub.s32 0, %v93
    %v95 = vrot.slane %v55, %v94
    %v96 = vlaneseq
    %v97 = vshrl.u32 %v96, 7
    %v98 = vsub.s32 0, %v97
    %v99 = vrot.slane %v59, %v98
    %v100 = vlaneseq
    %v101 = vshrl.u32 %v100, 7
    %v102 = vsub.s32 0, %v101
    %v103 = vrot.slane %v63, %v102
    %v104 = vlaneseq
    %v105 = vshrl.u32 %v104, 7
    %v106 = vsub.s32 0, %v105
    %v107 = vrot.slane %v67, %v106
    %v108 = vlaneseq
    %v109 = vshrl.u32 %v108, 7
    %v110 = vsub.s32 0, %v109
    %v111 = vrot.slane %v71, %v110
    %v112 = vlaneseq
    %v113 = vshrl.u32 %v112, 7
    %v114 = vsub.s32 0, %v113
    %v115 = vrot.slane %v75, %v114
    %v116 = vmul.f32 %v33, %v87
    %v117 = vmul.f32 %v33, %v91
    %v118 = vmul.f32 %v33, %v95
    %v119 = vmul.f32 %v33, %v99
    %v120 = vmul.f32 %v33, %v103
    %v121 = vmul.f32 %v33, %v107
    %v122 = vmul.f32 %v33, %v111
    %v123 = vmul.f32 %v33, %v115
    %v124 = vmul.f32 %v38, %v87
    %v125 = vmul.f32 %v38, %v91
    %v126 = vmul.f32 %v38, %v95
    %v127 = vmul.f32 %v38, %v99
    %v128 = vmul.f32 %v38, %v103
    %v129 = vmul.f32 %v38, %v107
    %v130 = vmul.f32 %v38, %v111
    %v131 = vmul.f32 %v38, %v115
    %132 = vset.pattern.permute.xlu0 1
    %133 = vperm.xlu0 %132, %v24
    %v134 = vpop.permute.xlu0 %133
    %136 = vset.pattern.permute.xlu0 1
    %137 = vperm.xlu0 %136, %v25
    %v138 = vpop.permute.xlu0 %137
    %v140 = vlaneseq
    %v141 = vshrl.u32 %v140, 7
    %v142 = vsub.s32 1, %v141
    %v143 = vrot.slane %v26, %v142
    %v144 = vlaneseq
    %v145 = vshrl.u32 %v144, 7
    %v146 = vsub.s32 5, %v145
    %v147 = vrot.slane %v26, %v146
    %v148 = vlaneseq
    %v149 = vshrl.u32 %v148, 7
    %v150 = vsub.s32 1, %v149
    %v151 = vrot.slane %v27, %v150
    %v152 = vlaneseq
    %v153 = vshrl.u32 %v152, 7
    %v154 = vsub.s32 5, %v153
    %v155 = vrot.slane %v27, %v154
    %v156 = vlaneseq
    %v157 = vshrl.u32 %v156, 7
    %v158 = vsub.s32 1, %v157
    %v159 = vrot.slane %v28, %v158
    %v160 = vlaneseq
    %v161 = vshrl.u32 %v160, 7
    %v162 = vsub.s32 5, %v161
    %v163 = vrot.slane %v28, %v162
    %v164 = vlaneseq
    %v165 = vshrl.u32 %v164, 7
    %v166 = vsub.s32 1, %v165
    %v167 = vrot.slane %v29, %v166
    %v168 = vlaneseq
    %v169 = vshrl.u32 %v168, 7
    %v170 = vsub.s32 5, %v169
    %v171 = vrot.slane %v29, %v170
    %v180 = vlaneseq
    %v181 = vshrl.u32 %v180, 7
    %v182 = vsub.s32 1, %v181
    %v183 = vrot.slane %v143, %v182
    %v184 = vlaneseq
    %v185 = vshrl.u32 %v184, 7
    %v186 = vsub.s32 1, %v185
    %v187 = vrot.slane %v147, %v186
    %v188 = vlaneseq
    %v189 = vshrl.u32 %v188, 7
    %v190 = vsub.s32 1, %v189
    %v191 = vrot.slane %v151, %v190
    %v192 = vlaneseq
    %v193 = vshrl.u32 %v192, 7
    %v194 = vsub.s32 1, %v193
    %v195 = vrot.slane %v155, %v194
    %v196 = vlaneseq
    %v197 = vshrl.u32 %v196, 7
    %v198 = vsub.s32 1, %v197
    %v199 = vrot.slane %v159, %v198
    %v200 = vlaneseq
    %v201 = vshrl.u32 %v200, 7
    %v202 = vsub.s32 1, %v201
    %v203 = vrot.slane %v163, %v202
    %v204 = vlaneseq
    %v205 = vshrl.u32 %v204, 7
    %v206 = vsub.s32 1, %v205
    %v207 = vrot.slane %v167, %v206
    %v208 = vlaneseq
    %v209 = vshrl.u32 %v208, 7
    %v210 = vsub.s32 1, %v209
    %v211 = vrot.slane %v171, %v210
    %v212 = vmul.f32 %v134, %v183
    %v213 = vmul.f32 %v134, %v187
    %v214 = vmul.f32 %v134, %v191
    %v215 = vmul.f32 %v134, %v195
    %v216 = vmul.f32 %v134, %v199
    %v217 = vmul.f32 %v134, %v203
    %v218 = vmul.f32 %v134, %v207
    %v219 = vmul.f32 %v134, %v211
    %v220 = vmul.f32 %v138, %v183
    %v221 = vmul.f32 %v138, %v187
    %v222 = vmul.f32 %v138, %v191
    %v223 = vmul.f32 %v138, %v195
    %v224 = vmul.f32 %v138, %v199
    %v225 = vmul.f32 %v138, %v203
    %v226 = vmul.f32 %v138, %v207
    %v227 = vmul.f32 %v138, %v211
    %v228 = vadd.f32 %v116, %v212
    %v229 = vadd.f32 %v117, %v213
    %v230 = vadd.f32 %v118, %v214
    %v231 = vadd.f32 %v119, %v215
    %v232 = vadd.f32 %v120, %v216
    %v233 = vadd.f32 %v121, %v217
    %v234 = vadd.f32 %v122, %v218
    %v235 = vadd.f32 %v123, %v219
    %v236 = vadd.f32 %v124, %v220
    %v237 = vadd.f32 %v125, %v221
    %v238 = vadd.f32 %v126, %v222
    %v239 = vadd.f32 %v127, %v223
    %v240 = vadd.f32 %v128, %v224
    %v241 = vadd.f32 %v129, %v225
    %v242 = vadd.f32 %v130, %v226
    %v243 = vadd.f32 %v131, %v227
    %244 = vset.pattern.permute.xlu0 2
    %245 = vperm.xlu0 %244, %v24
    %v246 = vpop.permute.xlu0 %245
    %248 = vset.pattern.permute.xlu0 2
    %249 = vperm.xlu0 %248, %v25
    %v250 = vpop.permute.xlu0 %249
    %v252 = vlaneseq
    %v253 = vshrl.u32 %v252, 7
    %v254 = vsub.s32 2, %v253
    %v255 = vrot.slane %v26, %v254
    %v256 = vlaneseq
    %v257 = vshrl.u32 %v256, 7
    %v258 = vsub.s32 6, %v257
    %v259 = vrot.slane %v26, %v258
    %v260 = vlaneseq
    %v261 = vshrl.u32 %v260, 7
    %v262 = vsub.s32 2, %v261
    %v263 = vrot.slane %v27, %v262
    %v264 = vlaneseq
    %v265 = vshrl.u32 %v264, 7
    %v266 = vsub.s32 6, %v265
    %v267 = vrot.slane %v27, %v266
    %v268 = vlaneseq
    %v269 = vshrl.u32 %v268, 7
    %v270 = vsub.s32 2, %v269
    %v271 = vrot.slane %v28, %v270
    %v272 = vlaneseq
    %v273 = vshrl.u32 %v272, 7
    %v274 = vsub.s32 6, %v273
    %v275 = vrot.slane %v28, %v274
    %v276 = vlaneseq
    %v277 = vshrl.u32 %v276, 7
    %v278 = vsub.s32 2, %v277
    %v279 = vrot.slane %v29, %v278
    %v280 = vlaneseq
    %v281 = vshrl.u32 %v280, 7
    %v282 = vsub.s32 6, %v281
    %v283 = vrot.slane %v29, %v282
    %v292 = vlaneseq
    %v293 = vshrl.u32 %v292, 7
    %v294 = vsub.s32 2, %v293
    %v295 = vrot.slane %v255, %v294
    %v296 = vlaneseq
    %v297 = vshrl.u32 %v296, 7
    %v298 = vsub.s32 2, %v297
    %v299 = vrot.slane %v259, %v298
    %v300 = vlaneseq
    %v301 = vshrl.u32 %v300, 7
    %v302 = vsub.s32 2, %v301
    %v303 = vrot.slane %v263, %v302
    %v304 = vlaneseq
    %v305 = vshrl.u32 %v304, 7
    %v306 = vsub.s32 2, %v305
    %v307 = vrot.slane %v267, %v306
    %v308 = vlaneseq
    %v309 = vshrl.u32 %v308, 7
    %v310 = vsub.s32 2, %v309
    %v311 = vrot.slane %v271, %v310
    %v312 = vlaneseq
    %v313 = vshrl.u32 %v312, 7
    %v314 = vsub.s32 2, %v313
    %v315 = vrot.slane %v275, %v314
    %v316 = vlaneseq
    %v317 = vshrl.u32 %v316, 7
    %v318 = vsub.s32 2, %v317
    %v319 = vrot.slane %v279, %v318
    %v320 = vlaneseq
    %v321 = vshrl.u32 %v320, 7
    %v322 = vsub.s32 2, %v321
    %v323 = vrot.slane %v283, %v322
    %v324 = vmul.f32 %v246, %v295
    %v325 = vmul.f32 %v246, %v299
    %v326 = vmul.f32 %v246, %v303
    %v327 = vmul.f32 %v246, %v307
    %v328 = vmul.f32 %v246, %v311
    %v329 = vmul.f32 %v246, %v315
    %v330 = vmul.f32 %v246, %v319
    %v331 = vmul.f32 %v246, %v323
    %v332 = vmul.f32 %v250, %v295
    %v333 = vmul.f32 %v250, %v299
    %v334 = vmul.f32 %v250, %v303
    %v335 = vmul.f32 %v250, %v307
    %v336 = vmul.f32 %v250, %v311
    %v337 = vmul.f32 %v250, %v315
    %v338 = vmul.f32 %v250, %v319
    %v339 = vmul.f32 %v250, %v323
    %v340 = vadd.f32 %v228, %v324
    %v341 = vadd.f32 %v229, %v325
    %v342 = vadd.f32 %v230, %v326
    %v343 = vadd.f32 %v231, %v327
    %v344 = vadd.f32 %v232, %v328
    %v345 = vadd.f32 %v233, %v329
    %v346 = vadd.f32 %v234, %v330
    %v347 = vadd.f32 %v235, %v331
    %v348 = vadd.f32 %v236, %v332
    %v349 = vadd.f32 %v237, %v333
    %v350 = vadd.f32 %v238, %v334
    %v351 = vadd.f32 %v239, %v335
    %v352 = vadd.f32 %v240, %v336
    %v353 = vadd.f32 %v241, %v337
    %v354 = vadd.f32 %v242, %v338
    %v355 = vadd.f32 %v243, %v339
    %356 = vst [vmem:[#allocation5] sm:$0xff] %v340
    %357 = vst [vmem:[#allocation5 + $0x8] sm:$0xff] %v341
    %358 = vst [vmem:[#allocation5 + $0x10] sm:$0xff] %v342
    %359 = vst [vmem:[#allocation5 + $0x18] sm:$0xff] %v343
    %360 = vst [vmem:[#allocation5 + $0x20] sm:$0xff] %v344
    %361 = vst [vmem:[#allocation5 + $0x28] sm:$0xff] %v345
    %362 = vst [vmem:[#allocation5 + $0x30] sm:$0xff] %v346
    %363 = vst [vmem:[#allocation5 + $0x38] sm:$0xff] %v347
    %364 = vst [vmem:[#allocation5 + $0x40] sm:$0x7] %v348
    %365 = vst [vmem:[#allocation5 + $0x48] sm:$0x7] %v349
    %366 = vst [vmem:[#allocation5 + $0x50] sm:$0x7] %v350
    %367 = vst [vmem:[#allocation5 + $0x58] sm:$0x7] %v351
    %368 = vst [vmem:[#allocation5 + $0x60] sm:$0x7] %v352
    %369 = vst [vmem:[#allocation5 + $0x68] sm:$0x7] %v353
    %370 = vst [vmem:[#allocation5 + $0x70] sm:$0x7] %v354
    %371 = vst [vmem:[#allocation5 + $0x78] sm:$0x7] %v355
    // Predicated region
    $region14: #{tpu_custom_call.1} parent=1 // pred_check
      _
    $region15: #{tpu_custom_call.1} parent=1 // pred_check_branch
      %373 = sbr.rel (0) target = $region17
    $region16: #{tpu_custom_call.1} parent=1 // pred_region
      %s375 = ssub.s32 2048, 2048
      %376 = vsyncadd [#allocation4], %s375
      %s377 = sshll.u32 [#allocation5], 4
      %s378 = int_to_ptr.vmem [resolvable:$true] %s377
      %383 = dma.vmem_to_hbm [thread:$0]  %s378, 2048, %s2, [#allocation4], 1024, 1024, 64
    $region17: #{tpu_custom_call.1} parent=1 // pred_fallthru
      _
    // Predicated region
    $region18: #{tpu_custom_call.1} parent=1 // pred_check
      _
    $region19: #{tpu_custom_call.1} parent=1 // pred_check_branch
      %385 = sbr.rel (0) target = $region21
    $region20: #{tpu_custom_call.1} parent=1 // pred_region
      %386 = dma.done [#allocation4], 2048
    $region21: #{tpu_custom_call.1} parent=1 // pred_fallthru
      _
    %387 = vsyncpa [#allocation3], 1
    %388 = vsyncpa [#allocation4], 1

</llo_original>
